<compile_context>
chip_gen: v6e
topology: v6e:2x2x1
jax: 0.10.0
libtpu: 0.0.40
codegen_flags: <defaults>
</compile_context>

<pallas_src>
import functools

import jax
import jax.numpy as jnp
from jax import lax
from jax.experimental import pallas as pl
from jax.experimental.pallas import tpu as pltpu

FOCAL_LENGTH = 1000.0
_SUM_LANES = 128  # lane-dense partial-sum slab width (one full lane group)


def _round_up(x, m):
    return ((x + m - 1) // m) * m


# ----------------------------------------------------------------------------
# Pallas kernel: projection + all loss partial sums for one batch block
# ----------------------------------------------------------------------------
def _bmp_loss_kernel(
    focal_length, nbeta,
    pj_ref,      # (3, tb, KP)  predicted 3D joints, coord-major, lane-padded
    gt2d_ref,    # (3, tb, KP)  gt 2D keypoints (x, y, conf); pads have conf=0
    gt3d_ref,    # (4, tb, KP)  gt 3D keypoints (x, y, z, conf); pads conf=0
    small_ref,   # (tb, 8+2*nbeta)  [t(3) | cc(2) | 1/size(2) | mask(1) | pb | gb]
    rot_ref,     # (tb, 512)    [pred rotmat pad256 | gt rotmat pad256]
    pv_ref,      # (tb, 3V)     pred vertices, flattened (f32 or bf16)
    gv_ref,      # (tb, 3V)     gt vertices, flattened (f32 or bf16)
    # outputs
    sums_ref,    # (1, tb, 128) per-sample partial sums, lane-dense
    kp2d_ref,    # (2, tb, KP)  un-normalized projected 2D keypoints
):
    small = small_ref[...]
    t_x, t_y, t_z = small[:, 0:1], small[:, 1:2], small[:, 2:3]
    cc_x, cc_y = small[:, 3:4], small[:, 4:5]
    inv_sx, inv_sy = small[:, 5:6], small[:, 6:7]
    mask = small[:, 7:8]
    pb = small[:, 8:8 + nbeta]
    gb = small[:, 8 + nbeta:8 + 2 * nbeta]

    pj_x, pj_y, pj_z = pj_ref[0], pj_ref[1], pj_ref[2]          # (tb, KP) each

    # ---- perspective projection (rotation = identity in BMPLoss.forward) ----
    inv_z = pl.reciprocal(pj_z + t_z)                           # exact 1/z
    kx = focal_length * (pj_x + t_x) * inv_z + cc_x
    ky = focal_length * (pj_y + t_y) * inv_z + cc_y
    kp2d_ref[0] = kx
    kp2d_ref[1] = ky

    # ---- 2D keypoint loss (|p - g| * (1/s), conf-weighted) -------------------
    conf2d = gt2d_ref[2]
    l2d = conf2d * (jnp.abs(kx - gt2d_ref[0]) * inv_sx
                    + jnp.abs(ky - gt2d_ref[1]) * inv_sy)
    s2d = jnp.sum(l2d, axis=1, keepdims=True)                   # (tb, 1)

    # ---- 3D keypoint loss (pelvis-centered, conf-weighted L1) ---------------
    g3x, g3y, g3z, conf3d = gt3d_ref[0], gt3d_ref[1], gt3d_ref[2], gt3d_ref[3]

    def centered_absdiff(p, g):
        pp = (p[:, 2:3] + p[:, 3:4]) * 0.5
        gp = (g[:, 2:3] + g[:, 3:4]) * 0.5
        return jnp.abs((p - pp) - (g - gp))

    l3d = conf3d * (centered_absdiff(pj_x, g3x)
                    + centered_absdiff(pj_y, g3y)
                    + centered_absdiff(pj_z, g3z))
    s3d = jnp.sum(l3d, axis=1, keepdims=True)                   # (tb, 1)

    # ---- has_smpl-gated partial sums (lane-dense flattened operands) --------
    pv = pv_ref[...].astype(jnp.float32)
    gv = gv_ref[...].astype(jnp.float32)
    shape_s = mask * jnp.sum(jnp.abs(pv - gv), axis=1, keepdims=True)

    rot = rot_ref[...]
    half = rot.shape[1] // 2                                     # 128-aligned
    dr = rot[:, :half] - rot[:, half:]                           # pads cancel
    pose_s = mask * jnp.sum(dr * dr, axis=1, keepdims=True)

    db = pb - gb
    betas_s = mask * jnp.sum(db * db, axis=1, keepdims=True)

    # ---- pack per-sample sums into one lane-dense slab (single unmasked vst)
    tb = mask.shape[0]
    lane = lax.broadcasted_iota(jnp.int32, (tb, _SUM_LANES), 1)

    def put(col, idx):
        return jnp.where(lane == idx, col, 0.0)

    sums_ref[0] = (put(s2d, 0) + put(s3d, 1) + put(shape_s, 2)
                   + put(pose_s, 3) + put(betas_s, 4) + put(mask, 5))


# ----------------------------------------------------------------------------
# Generation-aware tile / VMEM selection
# ----------------------------------------------------------------------------
def _vmem_capacity_bytes():
    try:
        return int(pltpu.get_tpu_info().vmem_capacity_bytes)
    except Exception:
        return 64 << 20  # conservative fallback (fits every generation)


def _block_vmem_bytes(tb, kp, w_small, w_rot, v3, vert_itemsize):
    """(8,128)-padded VMEM footprint of one grid-step block (single-buffered)."""
    rtb = _round_up(tb, 8)
    f32 = 4
    b = 0
    b += (3 + 3 + 4) * rtb * _round_up(kp, 128) * f32     # pj, gt2d, gt3d
    b += rtb * _round_up(w_small, 128) * f32               # fused small operands
    b += rtb * _round_up(w_rot, 128) * f32                 # fused rotmats
    b += 2 * rtb * _round_up(v3, 128) * vert_itemsize      # pred / gt vertices
    b += rtb * _SUM_LANES * f32                            # sums slab block
    b += 2 * rtb * _round_up(kp, 128) * f32                # kp2d block
    return b


def _select_tile_and_vmem(b, kp, w_small, w_rot, v3, vert_itemsize):
    cap = _vmem_capacity_bytes()
    multi_core = cap <= (80 << 20)       # v7x-like: 64 MiB/TC, 2 TCs share grid
    if multi_core:
        budget = cap - (12 << 20)        # ~52 MiB scoped budget on v7x
    else:
        budget = min(cap - (28 << 20), 100 << 20)   # ~100 MiB on v5e/v6e
    budget = max(budget, 16 << 20)

    cands = sorted([d for d in range(1, b + 1)
                    if b % d == 0 and (d % 8 == 0 or d == b)], reverse=True)

    def need(tb):
        # double-buffered inputs/outputs + headroom for Mosaic internal scratch
        return 2 * _block_vmem_bytes(tb, kp, w_small, w_rot, v3, vert_itemsize) \
            + (6 << 20)

    fitting = [t for t in cands if need(t) <= budget]
    if not fitting:
        # TODO(synk): also tile the vertex axis when a single batch row no
        # longer fits the scoped VMEM budget (V >> 6890 regime).
        fitting = [cands[-1]]

    if multi_core:
        deep = [t for t in fitting if b // t >= 4]   # >=2 pipelined steps / core
        tb = deep[0] if deep else fitting[-1]
    else:
        tb = fitting[0]                              # single TC: biggest tile

    vmem_limit = int(min(max(need(tb) + (2 << 20), 32 << 20), cap - (8 << 20)))
    return tb, vmem_limit


# ----------------------------------------------------------------------------
# pallas_call wrapper
# ----------------------------------------------------------------------------
def _bmp_loss_pallas(pj_cm, gt2d_cm, gt3d_cm, small, rot_f, pv_f, gv_f,
                     focal_length, nbeta):
    _, b, kp = pj_cm.shape
    w_small = small.shape[1]
    w_rot = rot_f.shape[1]
    v3 = pv_f.shape[1]

    tb, vmem_limit = _select_tile_and_vmem(
        b, kp, w_small, w_rot, v3, pv_f.dtype.itemsize)
    nb = b // tb

    in_specs = [
        pl.BlockSpec((3, tb, kp), lambda i: (0, i, 0)),   # pred joints
        pl.BlockSpec((3, tb, kp), lambda i: (0, i, 0)),   # gt 2D keypoints
        pl.BlockSpec((4, tb, kp), lambda i: (0, i, 0)),   # gt 3D keypoints
        pl.BlockSpec((tb, w_small), lambda i: (i, 0)),    # fused scalars/betas
        pl.BlockSpec((tb, w_rot), lambda i: (i, 0)),      # fused rotmats
        pl.BlockSpec((tb, v3), lambda i: (i, 0)),         # pred vertices (flat)
        pl.BlockSpec((tb, v3), lambda i: (i, 0)),         # gt vertices (flat)
    ]
    out_shapes = (
        jax.ShapeDtypeStruct((nb, tb, _SUM_LANES), jnp.float32),
        jax.ShapeDtypeStruct((2, b, kp), jnp.float32),
    )
    out_specs = (
        pl.BlockSpec((1, tb, _SUM_LANES), lambda i: (i, 0, 0)),
        pl.BlockSpec((2, tb, kp), lambda i: (0, i, 0)),
    )

    kernel = functools.partial(_bmp_loss_kernel, float(focal_length), int(nbeta))
    return pl.pallas_call(
        kernel,
        grid=(nb,),
        in_specs=in_specs,
        out_specs=out_specs,
        out_shape=out_shapes,
        compiler_params=pltpu.CompilerParams(
            dimension_semantics=("parallel",),
            vmem_limit_bytes=vmem_limit,
        ),
    )(pj_cm, gt2d_cm, gt3d_cm, small, rot_f, pv_f, gv_f)


# ----------------------------------------------------------------------------
# Glue (plain JAX): camera setup, axis-angle -> rotmat, dict plumbing
# ----------------------------------------------------------------------------
def quat_to_rotmat(quat):
    nq = quat / jnp.linalg.norm(quat, axis=1, keepdims=True)
    w, x, y, z = nq[:, 0], nq[:, 1], nq[:, 2], nq[:, 3]
    n = quat.shape[0]
    w2, x2, y2, z2 = w * w, x * x, y * y, z * z
    wx, wy, wz = w * x, w * y, w * z
    xy, xz, yz = x * y, x * z, y * z
    rot = jnp.stack([
        w2 + x2 - y2 - z2, 2 * xy - 2 * wz, 2 * wy + 2 * xz,
        2 * wz + 2 * xy, w2 - x2 + y2 - z2, 2 * yz - 2 * wx,
        2 * xz - 2 * wy, 2 * wx + 2 * yz, w2 - x2 - y2 + z2,
    ], axis=1).reshape(n, 3, 3)
    return rot


def batch_rodrigues(theta):
    """Axis-angle (N,3) -> rotation matrices (N,3,3), SPIN convention."""
    angle = jnp.linalg.norm(theta + 1e-8, axis=1, keepdims=True)
    normalized = theta / angle
    half = angle * 0.5
    quat = jnp.concatenate([jnp.cos(half), jnp.sin(half) * normalized], axis=1)
    return quat_to_rotmat(quat)


class BMPLossPallas:
    def __init__(self, beta=1.0, reduction='mean', loss_weight=1.0,
                 re_weight=None, normalize_kpts=False, pad_size=False,
                 adversarial_cfg=None, focal_length=FOCAL_LENGTH,
                 num_vertices=32, stream_vertices_bf16=False):
        # beta / reduction / loss_weight are kept for API parity; the reference
        # forward() (kpts_loss_type='L1Loss', criterion_regr=MSELoss) never
        # uses them, so plain L1 / MSE below matches the default module.
        self.beta = beta
        self.reduction = reduction
        self.loss_weight = loss_weight
        self.re_weight = re_weight
        self.normalize_kpts = normalize_kpts
        self.pad_size = pad_size
        self.adversarial_cfg = adversarial_cfg
        self.FOCAL_LENGTH = focal_length
        # Optional bf16 streaming of the HBM-bound vertex tensors (~2x DMA
        # bytes); off by default to preserve exact f32 semantics.
        self.stream_vertices_bf16 = stream_vertices_bf16
        # Deterministic synthetic J_regressor (17 x V).  Only used in the
        # eval_pose branch, which is off by default (matching the module).
        self.J_regressor = (jnp.arange(17 * num_vertices, dtype=jnp.float32)
                            .reshape(17, num_vertices)) / (17.0 * num_vertices)
        # TODO(synk): the SMPL body model from __init__ has no Pallas
        # equivalent and is not used in forward(); omitted.

    def __call__(self, pred, target, bboxes_confidence=None, pred_conf=False):
        pred_rotmat = pred['pred_rotmat']            # (B, 24, 3, 3)
        pred_camera = pred['pred_camera']            # (B, 3)
        pred_joints = pred['pred_joints']            # (B, 24, 3)
        pred_vertices = pred['pred_vertices']        # (B, V, 3)
        pred_betas = pred['pred_betas']              # (B, 10)

        gt_pose = target['gt_rotmat']                # (B, 72) axis-angle
        gt_shape = target['gt_shape']                # (B, 10)
        gt_keypoints_2d = target['gt_keypoints_2d']  # (B, 24, 3)
        gt_keypoints_3d = target['gt_keypoints_3d']  # (B, 24, 4)
        has_smpl = target['has_smpl']                # (B,)
        gt_vertices = target['gt_vertices']          # (B, V, 3)
        gt_bboxes = target['gt_bboxes']              # (B, 4)
        raw_images = target['raw_images']            # (N_img, 3, H, W)
        img_meta = target['img_meta']
        idxs_in_batch = target['idxs_in_batch']      # (B, 1)
        pose_idx = target['pose_idx']

        batch_size = pred_joints.shape[0]
        k = pred_joints.shape[1]
        v = pred_vertices.shape[1]
        nbeta = pred_betas.shape[1]
        idxs = idxs_in_batch[:, 0].astype(jnp.int32)

        # ---- image size / camera / translation (matches reference) ----------
        if self.pad_size:
            img_pad_shape = jnp.asarray(
                [m['pad_shape'][:2] for m in img_meta], dtype=jnp.float32)
            img_size = img_pad_shape[idxs]
        else:
            wh = jnp.asarray(raw_images.shape[:-3:-1], dtype=jnp.float32)  # (W, H)
            img_size = jnp.zeros((batch_size, 2), jnp.float32) + wh
        imgs_size = jnp.max(img_size, axis=1)
        camera_center = img_size / 2.0
        depth = 2.0 * self.FOCAL_LENGTH / (1e-8 + pred_camera[:, 0] * imgs_size)
        translation = jnp.concatenate([pred_camera[:, 1:], depth[:, None]], axis=1)

        scaled_img_shape = jnp.asarray(
            [(m['img_shape'][1], m['img_shape'][0]) for m in img_meta],
            dtype=jnp.float32)
        scaled_img_size = scaled_img_shape[idxs]
        inv_scaled_size = 1.0 / scaled_img_size
        # Note: the normalize_kpts=True branch subtracts the same center from
        # pred and gt before dividing, so the resulting loss is identical to
        # the normalize_kpts=False branch; both reduce to |p - g| * (1/s).

        # GT pose (axis-angle) -> rotation matrices; masking inside the kernel
        # makes converting all samples numerically equivalent to selecting.
        gt_rotmat_f = batch_rodrigues(gt_pose.reshape(-1, 3)).reshape(batch_size, -1)
        pr_f = pred_rotmat.reshape(batch_size, -1)
        r_real = pr_f.shape[1]                       # 24*3*3 = 216
        rp = _round_up(r_real, 128)                  # 256 -> in-kernel split aligned
        rot_f = jnp.concatenate(
            [jnp.pad(pr_f.astype(jnp.float32), ((0, 0), (0, rp - r_real))),
             jnp.pad(gt_rotmat_f.astype(jnp.float32), ((0, 0), (0, rp - r_real)))],
            axis=1)                                  # (B, 2*rp)

        has_smpl_mask = (has_smpl == 1).astype(jnp.float32).reshape(batch_size, 1)

        # Fused small operand slab: [t(3) | cc(2) | 1/size(2) | mask(1) | pb | gb]
        small = jnp.concatenate(
            [translation, camera_center, inv_scaled_size, has_smpl_mask,
             pred_betas.astype(jnp.float32), gt_shape.astype(jnp.float32)],
            axis=1).astype(jnp.float32)              # (B, 8 + 2*nbeta)

        # Coord-major, lane-padded keypoint tensors (conf pads are zero so the
        # padded lanes contribute nothing to the loss sums).
        kp = _round_up(k, 128)

        def coord_major(x):                          # (B, K, C) -> (C, B, KP)
            x = jnp.transpose(x, (2, 0, 1)).astype(jnp.float32)
            return jnp.pad(x, ((0, 0), (0, 0), (0, kp - k)))

        pj_cm = coord_major(pred_joints)
        gt2d_cm = coord_major(gt_keypoints_2d)
        gt3d_cm = coord_major(gt_keypoints_3d)

        vdt = jnp.bfloat16 if self.stream_vertices_bf16 else jnp.float32
        pv_f = pred_vertices.reshape(batch_size, -1).astype(vdt)
        gv_f = gt_vertices.reshape(batch_size, -1).astype(vdt)

        sums, kp2d_cm = _bmp_loss_pallas(
            pj_cm, gt2d_cm, gt3d_cm, small, rot_f, pv_f, gv_f,
            self.FOCAL_LENGTH, nbeta)

        # Final tiny reductions / divides on the lane-dense partial-sum slab.
        sums = sums.reshape(batch_size, _SUM_LANES)
        s2d = sums[:, 0]
        s3d = sums[:, 1]
        shape_s = sums[:, 2]
        pose_s = sums[:, 3]
        betas_s = sums[:, 4]
        msum = sums[:, 5]

        error_ranks = s2d / (2.0 * k)                        # per-sample mean
        loss_kp2d = jnp.sum(s2d) / (batch_size * 2.0 * k)
        loss_kp3d = jnp.sum(s3d) / (batch_size * 3.0 * k)
        n_valid = jnp.sum(msum)
        safe_n = jnp.maximum(n_valid, 1.0)
        loss_shape = jnp.where(n_valid > 0,
                               jnp.sum(shape_s) / (safe_n * 3.0 * v), 0.0)
        loss_pose = jnp.where(n_valid > 0,
                              jnp.sum(pose_s) / (safe_n * float(r_real)), 0.0)
        loss_betas = jnp.where(n_valid > 0,
                               jnp.sum(betas_s) / (safe_n * float(nbeta)), 0.0)

        # (2, B, KP) -> (B, K, 2) original (un-normalized) projected keypoints.
        pred_keypoints_2d_smpl_orig = jnp.transpose(kp2d_cm[:, :, :k], (1, 2, 0))

        # pred_conf = False path: loss_conf is zero.
        # TODO(synk): compute_oks / confidence MSE path (pred_conf=True) not
        # translated (exp over masked OKS) — not exercised by default.
        loss_conf = jnp.float32(0.0)

        loss_dict = {
            'loss_keypoints_smpl': loss_kp2d * 4.0,
            'loss_keypoints_3d_smpl': loss_kp3d * 4.0,
            'loss_shape_smpl': loss_shape,
            'loss_regr_pose': loss_pose,
            'loss_regr_betas': loss_betas * 0.01,
            'loss_conf': loss_conf,
            'img$raw_images': raw_images,
            'img$idxs_in_batch': idxs_in_batch,
            'img$pose_idx': pose_idx,
            'img$pred_vertices': pred_vertices,
            'img$translation': translation,
            'img$error_rank': -bboxes_confidence,
            'img$pred_bboxes': gt_bboxes,
            'img$pred_keypoints_2d_smpl': pred_keypoints_2d_smpl_orig[:, -24:, :],
            'img$gt_keypoints_2d': gt_keypoints_2d,
        }
        if self.adversarial_cfg:
            loss_dict['pred_pose_shape'] = jnp.concatenate(
                [pr_f, pred_betas], axis=1)
        if self.re_weight:
            for kk, vv in self.re_weight.items():
                if kk.startswith('adv_loss'):
                    loss_dict[kk] *= vv
                else:
                    loss_dict[f'loss_{kk}'] *= vv
        # TODO(synk): eval_pose branch (Procrustes alignment via batch_svd /
        # batch_det) has no Pallas equivalent and is off by default; omitted.
        return loss_dict, error_ranks


# ----------------------------------------------------------------------------
# Demo
# ----------------------------------------------------------------------------
if __name__ == "__main__":
    key = jax.random.PRNGKey(0)
    B, K, V, H, W = 2, 24, 32, 16, 16
    ks = jax.random.split(key, 12)

    pred = {
        'pred_rotmat': jax.random.normal(ks[0], (B, 24, 3, 3), jnp.float32),
        'pred_camera': jnp.abs(jax.random.normal(ks[1], (B, 3), jnp.float32)) + 0.5,
        'pred_joints': jax.random.normal(ks[2], (B, K, 3), jnp.float32),
        'pred_vertices': jax.random.normal(ks[3], (B, V, 3), jnp.float32),
        'pred_betas': jax.random.normal(ks[4], (B, 10), jnp.float32),
        'pred_confs': jnp.ones((B, 1), jnp.float32) * 0.5,
    }
    target = {
        'gt_rotmat': 0.3 * jax.random.normal(ks[5], (B, 72), jnp.float32),  # axis-angle
        'gt_shape': jax.random.normal(ks[6], (B, 10), jnp.float32),
        'gt_camera': jnp.ones((B, 3), jnp.float32),
        'gt_keypoints_2d': jnp.concatenate(
            [W * jax.random.uniform(ks[7], (B, K, 2), jnp.float32),
             (jax.random.uniform(ks[8], (B, K, 1), jnp.float32) > 0.3).astype(jnp.float32)],
            axis=-1),
        'gt_keypoints_3d': jnp.concatenate(
            [jax.random.normal(ks[9], (B, K, 3), jnp.float32),
             jnp.ones((B, K, 1), jnp.float32)], axis=-1),
        'has_smpl': jnp.array([1.0, 0.0], jnp.float32),
        'gt_vertices': jax.random.normal(ks[10], (B, V, 3), jnp.float32),
        'gt_bboxes': jnp.array([[0.0, 0.0, 10.0, 12.0],
                                [2.0, 2.0, 14.0, 15.0]], jnp.float32),
        'raw_images': jax.random.normal(ks[11], (1, 3, H, W), jnp.float32),
        'img_meta': [{'img_shape': (H, W, 3), 'ori_shape': (H, W, 3),
                      'pad_shape': (H, W, 3)}],
        'idxs_in_batch': jnp.zeros((B, 1), jnp.float32),
        'pose_idx': jnp.zeros((B, 1), jnp.float32),
        'scene': jnp.zeros((B,), jnp.float32),
    }
    bboxes_confidence = jnp.array([0.9, 0.7], jnp.float32)

    loss_fn = BMPLossPallas()
    loss_dict, error_ranks = loss_fn(pred, target,
                                     bboxes_confidence=bboxes_confidence,
                                     pred_conf=False)

    total = sum(val for name, val in loss_dict.items() if name.startswith('loss'))
    jax.block_until_ready(total)
    jax.block_until_ready(error_ranks)
    print("KERNEL_OK")
</pallas_src>

<mosaic_0001>
module attributes {stable_mosaic.version = 11 : i64} {
  func.func @_bmp_loss_kernel(%arg0: i32, %arg1: memref<3x2x128xf32, #tpu.memory_space<vmem>>, %arg2: memref<3x2x128xf32, #tpu.memory_space<vmem>>, %arg3: memref<4x2x128xf32, #tpu.memory_space<vmem>>, %arg4: memref<2x28xf32, #tpu.memory_space<vmem>>, %arg5: memref<2x512xf32, #tpu.memory_space<vmem>>, %arg6: memref<2x96xf32, #tpu.memory_space<vmem>>, %arg7: memref<2x96xf32, #tpu.memory_space<vmem>>, %arg8: memref<1x2x128xf32, #tpu.memory_space<vmem>>, %arg9: memref<2x2x128xf32, #tpu.memory_space<vmem>>) attributes {dimension_semantics = [#tpu.dimension_semantics<parallel>], iteration_bounds = array<i64: 1>, scalar_prefetch = 0 : i64, scratch_operands = 0 : i64, tpu.core_type = #tpu.core_type<tc>, window_params = [{transform_indices = @transform_0, window_bounds = array<i64: 3, 2, 128>}, {transform_indices = @transform_1, window_bounds = array<i64: 3, 2, 128>}, {transform_indices = @transform_2, window_bounds = array<i64: 4, 2, 128>}, {transform_indices = @transform_3, window_bounds = array<i64: 2, 28>}, {transform_indices = @transform_4, window_bounds = array<i64: 2, 512>}, {transform_indices = @transform_5, window_bounds = array<i64: 2, 96>}, {transform_indices = @transform_6, window_bounds = array<i64: 2, 96>}, {transform_indices = @transform_7, window_bounds = array<i64: 1, 2, 128>}, {transform_indices = @transform_8, window_bounds = array<i64: 2, 2, 128>}]} {
    %c0 = arith.constant 0 : index
    %c0_0 = arith.constant 0 : index
    %0 = vector.load %arg4[%c0, %c0_0] : memref<2x28xf32, #tpu.memory_space<vmem>>, vector<2x28xf32>
    %1 = vector.extract_strided_slice %0 {offsets = [0, 0], sizes = [2, 1], strides = [1, 1]} : vector<2x28xf32> to vector<2x1xf32>
    %2 = vector.extract_strided_slice %0 {offsets = [0, 1], sizes = [2, 1], strides = [1, 1]} : vector<2x28xf32> to vector<2x1xf32>
    %3 = vector.extract_strided_slice %0 {offsets = [0, 2], sizes = [2, 1], strides = [1, 1]} : vector<2x28xf32> to vector<2x1xf32>
    %4 = vector.extract_strided_slice %0 {offsets = [0, 3], sizes = [2, 1], strides = [1, 1]} : vector<2x28xf32> to vector<2x1xf32>
    %5 = vector.extract_strided_slice %0 {offsets = [0, 4], sizes = [2, 1], strides = [1, 1]} : vector<2x28xf32> to vector<2x1xf32>
    %6 = vector.extract_strided_slice %0 {offsets = [0, 5], sizes = [2, 1], strides = [1, 1]} : vector<2x28xf32> to vector<2x1xf32>
    %7 = vector.extract_strided_slice %0 {offsets = [0, 6], sizes = [2, 1], strides = [1, 1]} : vector<2x28xf32> to vector<2x1xf32>
    %8 = vector.extract_strided_slice %0 {offsets = [0, 7], sizes = [2, 1], strides = [1, 1]} : vector<2x28xf32> to vector<2x1xf32>
    %9 = vector.extract_strided_slice %0 {offsets = [0, 8], sizes = [2, 10], strides = [1, 1]} : vector<2x28xf32> to vector<2x10xf32>
    %10 = vector.extract_strided_slice %0 {offsets = [0, 18], sizes = [2, 10], strides = [1, 1]} : vector<2x28xf32> to vector<2x10xf32>
    %c0_1 = arith.constant 0 : index
    %c0_2 = arith.constant 0 : index
    %c0_3 = arith.constant 0 : index
    %11 = vector.load %arg1[%c0_1, %c0_2, %c0_3] : memref<3x2x128xf32, #tpu.memory_space<vmem>>, vector<1x2x128xf32>
    %12 = vector.shape_cast %11 : vector<1x2x128xf32> to vector<2x128xf32>
    %c1 = arith.constant 1 : index
    %c0_4 = arith.constant 0 : index
    %c0_5 = arith.constant 0 : index
    %13 = vector.load %arg1[%c1, %c0_4, %c0_5] : memref<3x2x128xf32, #tpu.memory_space<vmem>>, vector<1x2x128xf32>
    %14 = vector.shape_cast %13 : vector<1x2x128xf32> to vector<2x128xf32>
    %c2 = arith.constant 2 : index
    %c0_6 = arith.constant 0 : index
    %c0_7 = arith.constant 0 : index
    %15 = vector.load %arg1[%c2, %c0_6, %c0_7] : memref<3x2x128xf32, #tpu.memory_space<vmem>>, vector<1x2x128xf32>
    %16 = vector.shape_cast %15 : vector<1x2x128xf32> to vector<2x128xf32>
    %17 = vector.broadcast %3 : vector<2x1xf32> to vector<2x128xf32>
    %18 = arith.addf %16, %17 : vector<2x128xf32>
    %19 = tpu.reciprocal %18 : vector<2x128xf32> -> vector<2x128xf32>
    %20 = vector.broadcast %1 : vector<2x1xf32> to vector<2x128xf32>
    %21 = arith.addf %12, %20 : vector<2x128xf32>
    %cst = arith.constant 1.000000e+03 : f32
    %22 = vector.broadcast %cst : f32 to vector<2x128xf32>
    %23 = arith.mulf %22, %21 : vector<2x128xf32>
    %24 = arith.mulf %23, %19 : vector<2x128xf32>
    %25 = vector.broadcast %4 : vector<2x1xf32> to vector<2x128xf32>
    %26 = arith.addf %24, %25 : vector<2x128xf32>
    %27 = vector.broadcast %2 : vector<2x1xf32> to vector<2x128xf32>
    %28 = arith.addf %14, %27 : vector<2x128xf32>
    %cst_8 = arith.constant 1.000000e+03 : f32
    %29 = vector.broadcast %cst_8 : f32 to vector<2x128xf32>
    %30 = arith.mulf %29, %28 : vector<2x128xf32>
    %31 = arith.mulf %30, %19 : vector<2x128xf32>
    %32 = vector.broadcast %5 : vector<2x1xf32> to vector<2x128xf32>
    %33 = arith.addf %31, %32 : vector<2x128xf32>
    %c0_9 = arith.constant 0 : index
    %c0_10 = arith.constant 0 : index
    %c0_11 = arith.constant 0 : index
    %34 = vector.load %arg9[%c0_9, %c0_10, %c0_11] : memref<2x2x128xf32, #tpu.memory_space<vmem>>, vector<1x2x128xf32>
    %35 = vector.shape_cast %34 : vector<1x2x128xf32> to vector<2x128xf32>
    %36 = vector.shape_cast %26 : vector<2x128xf32> to vector<1x2x128xf32>
    tpu.vector_store %arg9[%c0_9, %c0_10, %c0_11], %36 {strides = array<i32>} : memref<2x2x128xf32, #tpu.memory_space<vmem>>, vector<1x2x128xf32>,
    %c1_12 = arith.constant 1 : index
    %c0_13 = arith.constant 0 : index
    %c0_14 = arith.constant 0 : index
    %37 = vector.load %arg9[%c1_12, %c0_13, %c0_14] : memref<2x2x128xf32, #tpu.memory_space<vmem>>, vector<1x2x128xf32>
    %38 = vector.shape_cast %37 : vector<1x2x128xf32> to vector<2x128xf32>
    %39 = vector.shape_cast %33 : vector<2x128xf32> to vector<1x2x128xf32>
    tpu.vector_store %arg9[%c1_12, %c0_13, %c0_14], %39 {strides = array<i32>} : memref<2x2x128xf32, #tpu.memory_space<vmem>>, vector<1x2x128xf32>,
    %c2_15 = arith.constant 2 : index
    %c0_16 = arith.constant 0 : index
    %c0_17 = arith.constant 0 : index
    %40 = vector.load %arg2[%c2_15, %c0_16, %c0_17] : memref<3x2x128xf32, #tpu.memory_space<vmem>>, vector<1x2x128xf32>
    %41 = vector.shape_cast %40 : vector<1x2x128xf32> to vector<2x128xf32>
    %c0_18 = arith.constant 0 : index
    %c0_19 = arith.constant 0 : index
    %c0_20 = arith.constant 0 : index
    %42 = vector.load %arg2[%c0_18, %c0_19, %c0_20] : memref<3x2x128xf32, #tpu.memory_space<vmem>>, vector<1x2x128xf32>
    %43 = vector.shape_cast %42 : vector<1x2x128xf32> to vector<2x128xf32>
    %44 = arith.subf %26, %43 : vector<2x128xf32>
    %45 = math.absf %44 : vector<2x128xf32>
    %46 = vector.broadcast %6 : vector<2x1xf32> to vector<2x128xf32>
    %47 = arith.mulf %45, %46 : vector<2x128xf32>
    %c1_21 = arith.constant 1 : index
    %c0_22 = arith.constant 0 : index
    %c0_23 = arith.constant 0 : index
    %48 = vector.load %arg2[%c1_21, %c0_22, %c0_23] : memref<3x2x128xf32, #tpu.memory_space<vmem>>, vector<1x2x128xf32>
    %49 = vector.shape_cast %48 : vector<1x2x128xf32> to vector<2x128xf32>
    %50 = arith.subf %33, %49 : vector<2x128xf32>
    %51 = math.absf %50 : vector<2x128xf32>
    %52 = vector.broadcast %7 : vector<2x1xf32> to vector<2x128xf32>
    %53 = arith.mulf %51, %52 : vector<2x128xf32>
    %54 = arith.addf %47, %53 : vector<2x128xf32>
    %55 = arith.mulf %41, %54 : vector<2x128xf32>
    %cst_24 = arith.constant dense<0.000000e+00> : vector<2xf32>
    %56 = vector.multi_reduction <add>, %55, %cst_24 [1] : vector<2x128xf32> to vector<2xf32>
    %57 = vector.shape_cast %56 : vector<2xf32> to vector<2x1xf32>
    %c0_25 = arith.constant 0 : index
    %c0_26 = arith.constant 0 : index
    %c0_27 = arith.constant 0 : index
    %58 = vector.load %arg3[%c0_25, %c0_26, %c0_27] : memref<4x2x128xf32, #tpu.memory_space<vmem>>, vector<1x2x128xf32>
    %59 = vector.shape_cast %58 : vector<1x2x128xf32> to vector<2x128xf32>
    %c1_28 = arith.constant 1 : index
    %c0_29 = arith.constant 0 : index
    %c0_30 = arith.constant 0 : index
    %60 = vector.load %arg3[%c1_28, %c0_29, %c0_30] : memref<4x2x128xf32, #tpu.memory_space<vmem>>, vector<1x2x128xf32>
    %61 = vector.shape_cast %60 : vector<1x2x128xf32> to vector<2x128xf32>
    %c2_31 = arith.constant 2 : index
    %c0_32 = arith.constant 0 : index
    %c0_33 = arith.constant 0 : index
    %62 = vector.load %arg3[%c2_31, %c0_32, %c0_33] : memref<4x2x128xf32, #tpu.memory_space<vmem>>, vector<1x2x128xf32>
    %63 = vector.shape_cast %62 : vector<1x2x128xf32> to vector<2x128xf32>
    %c3 = arith.constant 3 : index
    %c0_34 = arith.constant 0 : index
    %c0_35 = arith.constant 0 : index
    %64 = vector.load %arg3[%c3, %c0_34, %c0_35] : memref<4x2x128xf32, #tpu.memory_space<vmem>>, vector<1x2x128xf32>
    %65 = vector.shape_cast %64 : vector<1x2x128xf32> to vector<2x128xf32>
    %66 = vector.extract_strided_slice %12 {offsets = [0, 2], sizes = [2, 1], strides = [1, 1]} : vector<2x128xf32> to vector<2x1xf32>
    %67 = vector.extract_strided_slice %12 {offsets = [0, 3], sizes = [2, 1], strides = [1, 1]} : vector<2x128xf32> to vector<2x1xf32>
    %68 = arith.addf %66, %67 : vector<2x1xf32>
    %cst_36 = arith.constant 5.000000e-01 : f32
    %69 = vector.broadcast %cst_36 : f32 to vector<2x1xf32>
    %70 = arith.mulf %68, %69 : vector<2x1xf32>
    %71 = vector.extract_strided_slice %59 {offsets = [0, 2], sizes = [2, 1], strides = [1, 1]} : vector<2x128xf32> to vector<2x1xf32>
    %72 = vector.extract_strided_slice %59 {offsets = [0, 3], sizes = [2, 1], strides = [1, 1]} : vector<2x128xf32> to vector<2x1xf32>
    %73 = arith.addf %71, %72 : vector<2x1xf32>
    %cst_37 = arith.constant 5.000000e-01 : f32
    %74 = vector.broadcast %cst_37 : f32 to vector<2x1xf32>
    %75 = arith.mulf %73, %74 : vector<2x1xf32>
    %76 = vector.broadcast %70 : vector<2x1xf32> to vector<2x128xf32>
    %77 = arith.subf %12, %76 : vector<2x128xf32>
    %78 = vector.broadcast %75 : vector<2x1xf32> to vector<2x128xf32>
    %79 = arith.subf %59, %78 : vector<2x128xf32>
    %80 = arith.subf %77, %79 : vector<2x128xf32>
    %81 = math.absf %80 : vector<2x128xf32>
    %82 = vector.extract_strided_slice %14 {offsets = [0, 2], sizes = [2, 1], strides = [1, 1]} : vector<2x128xf32> to vector<2x1xf32>
    %83 = vector.extract_strided_slice %14 {offsets = [0, 3], sizes = [2, 1], strides = [1, 1]} : vector<2x128xf32> to vector<2x1xf32>
    %84 = arith.addf %82, %83 : vector<2x1xf32>
    %cst_38 = arith.constant 5.000000e-01 : f32
    %85 = vector.broadcast %cst_38 : f32 to vector<2x1xf32>
    %86 = arith.mulf %84, %85 : vector<2x1xf32>
    %87 = vector.extract_strided_slice %61 {offsets = [0, 2], sizes = [2, 1], strides = [1, 1]} : vector<2x128xf32> to vector<2x1xf32>
    %88 = vector.extract_strided_slice %61 {offsets = [0, 3], sizes = [2, 1], strides = [1, 1]} : vector<2x128xf32> to vector<2x1xf32>
    %89 = arith.addf %87, %88 : vector<2x1xf32>
    %cst_39 = arith.constant 5.000000e-01 : f32
    %90 = vector.broadcast %cst_39 : f32 to vector<2x1xf32>
    %91 = arith.mulf %89, %90 : vector<2x1xf32>
    %92 = vector.broadcast %86 : vector<2x1xf32> to vector<2x128xf32>
    %93 = arith.subf %14, %92 : vector<2x128xf32>
    %94 = vector.broadcast %91 : vector<2x1xf32> to vector<2x128xf32>
    %95 = arith.subf %61, %94 : vector<2x128xf32>
    %96 = arith.subf %93, %95 : vector<2x128xf32>
    %97 = math.absf %96 : vector<2x128xf32>
    %98 = arith.addf %81, %97 : vector<2x128xf32>
    %99 = vector.extract_strided_slice %16 {offsets = [0, 2], sizes = [2, 1], strides = [1, 1]} : vector<2x128xf32> to vector<2x1xf32>
    %100 = vector.extract_strided_slice %16 {offsets = [0, 3], sizes = [2, 1], strides = [1, 1]} : vector<2x128xf32> to vector<2x1xf32>
    %101 = arith.addf %99, %100 : vector<2x1xf32>
    %cst_40 = arith.constant 5.000000e-01 : f32
    %102 = vector.broadcast %cst_40 : f32 to vector<2x1xf32>
    %103 = arith.mulf %101, %102 : vector<2x1xf32>
    %104 = vector.extract_strided_slice %63 {offsets = [0, 2], sizes = [2, 1], strides = [1, 1]} : vector<2x128xf32> to vector<2x1xf32>
    %105 = vector.extract_strided_slice %63 {offsets = [0, 3], sizes = [2, 1], strides = [1, 1]} : vector<2x128xf32> to vector<2x1xf32>
    %106 = arith.addf %104, %105 : vector<2x1xf32>
    %cst_41 = arith.constant 5.000000e-01 : f32
    %107 = vector.broadcast %cst_41 : f32 to vector<2x1xf32>
    %108 = arith.mulf %106, %107 : vector<2x1xf32>
    %109 = vector.broadcast %103 : vector<2x1xf32> to vector<2x128xf32>
    %110 = arith.subf %16, %109 : vector<2x128xf32>
    %111 = vector.broadcast %108 : vector<2x1xf32> to vector<2x128xf32>
    %112 = arith.subf %63, %111 : vector<2x128xf32>
    %113 = arith.subf %110, %112 : vector<2x128xf32>
    %114 = math.absf %113 : vector<2x128xf32>
    %115 = arith.addf %98, %114 : vector<2x128xf32>
    %116 = arith.mulf %65, %115 : vector<2x128xf32>
    %cst_42 = arith.constant dense<0.000000e+00> : vector<2xf32>
    %117 = vector.multi_reduction <add>, %116, %cst_42 [1] : vector<2x128xf32> to vector<2xf32>
    %118 = vector.shape_cast %117 : vector<2xf32> to vector<2x1xf32>
    %c0_43 = arith.constant 0 : index
    %c0_44 = arith.constant 0 : index
    %119 = vector.load %arg6[%c0_43, %c0_44] : memref<2x96xf32, #tpu.memory_space<vmem>>, vector<2x96xf32>
    %c0_45 = arith.constant 0 : index
    %c0_46 = arith.constant 0 : index
    %120 = vector.load %arg7[%c0_45, %c0_46] : memref<2x96xf32, #tpu.memory_space<vmem>>, vector<2x96xf32>
    %121 = arith.subf %119, %120 : vector<2x96xf32>
    %122 = math.absf %121 : vector<2x96xf32>
    %cst_47 = arith.constant dense<0.000000e+00> : vector<2xf32>
    %123 = vector.multi_reduction <add>, %122, %cst_47 [1] : vector<2x96xf32> to vector<2xf32>
    %124 = vector.shape_cast %123 : vector<2xf32> to vector<2x1xf32>
    %125 = arith.mulf %8, %124 : vector<2x1xf32>
    %c0_48 = arith.constant 0 : index
    %c0_49 = arith.constant 0 : index
    %126 = vector.load %arg5[%c0_48, %c0_49] : memref<2x512xf32, #tpu.memory_space<vmem>>, vector<2x512xf32>
    %127 = vector.extract_strided_slice %126 {offsets = [0, 0], sizes = [2, 256], strides = [1, 1]} : vector<2x512xf32> to vector<2x256xf32>
    %128 = vector.extract_strided_slice %126 {offsets = [0, 256], sizes = [2, 256], strides = [1, 1]} : vector<2x512xf32> to vector<2x256xf32>
    %129 = arith.subf %127, %128 : vector<2x256xf32>
    %130 = arith.mulf %129, %129 : vector<2x256xf32>
    %cst_50 = arith.constant dense<0.000000e+00> : vector<2xf32>
    %131 = vector.multi_reduction <add>, %130, %cst_50 [1] : vector<2x256xf32> to vector<2xf32>
    %132 = vector.shape_cast %131 : vector<2xf32> to vector<2x1xf32>
    %133 = arith.mulf %8, %132 : vector<2x1xf32>
    %134 = arith.subf %9, %10 : vector<2x10xf32>
    %135 = arith.mulf %134, %134 : vector<2x10xf32>
    %cst_51 = arith.constant dense<0.000000e+00> : vector<2xf32>
    %136 = vector.multi_reduction <add>, %135, %cst_51 [1] : vector<2x10xf32> to vector<2xf32>
    %137 = vector.shape_cast %136 : vector<2xf32> to vector<2x1xf32>
    %138 = arith.mulf %8, %137 : vector<2x1xf32>
    %139 = tpu.iota {dimensions = array<i32: 1>} : vector<2x128xi32>
    %c0_i32 = arith.constant 0 : i32
    %140 = vector.broadcast %c0_i32 : i32 to vector<2x128xi32>
    %141 = arith.cmpi eq, %139, %140 : vector<2x128xi32>
    %cst_52 = arith.constant 0.000000e+00 : f32
    %142 = vector.shape_cast %57 : vector<2x1xf32> to vector<2x1xf32>
    %143 = vector.broadcast %142 : vector<2x1xf32> to vector<2x128xf32>
    %144 = vector.broadcast %cst_52 : f32 to vector<2x128xf32>
    %145 = arith.select %141, %143, %144 : vector<2x128xi1>, vector<2x128xf32>
    %c1_i32 = arith.constant 1 : i32
    %146 = vector.broadcast %c1_i32 : i32 to vector<2x128xi32>
    %147 = arith.cmpi eq, %139, %146 : vector<2x128xi32>
    %cst_53 = arith.constant 0.000000e+00 : f32
    %148 = vector.shape_cast %118 : vector<2x1xf32> to vector<2x1xf32>
    %149 = vector.broadcast %148 : vector<2x1xf32> to vector<2x128xf32>
    %150 = vector.broadcast %cst_53 : f32 to vector<2x128xf32>
    %151 = arith.select %147, %149, %150 : vector<2x128xi1>, vector<2x128xf32>
    %152 = arith.addf %145, %151 : vector<2x128xf32>
    %c2_i32 = arith.constant 2 : i32
    %153 = vector.broadcast %c2_i32 : i32 to vector<2x128xi32>
    %154 = arith.cmpi eq, %139, %153 : vector<2x128xi32>
    %cst_54 = arith.constant 0.000000e+00 : f32
    %155 = vector.shape_cast %125 : vector<2x1xf32> to vector<2x1xf32>
    %156 = vector.broadcast %155 : vector<2x1xf32> to vector<2x128xf32>
    %157 = vector.broadcast %cst_54 : f32 to vector<2x128xf32>
    %158 = arith.select %154, %156, %157 : vector<2x128xi1>, vector<2x128xf32>
    %159 = arith.addf %152, %158 : vector<2x128xf32>
    %c3_i32 = arith.constant 3 : i32
    %160 = vector.broadcast %c3_i32 : i32 to vector<2x128xi32>
    %161 = arith.cmpi eq, %139, %160 : vector<2x128xi32>
    %cst_55 = arith.constant 0.000000e+00 : f32
    %162 = vector.shape_cast %133 : vector<2x1xf32> to vector<2x1xf32>
    %163 = vector.broadcast %162 : vector<2x1xf32> to vector<2x128xf32>
    %164 = vector.broadcast %cst_55 : f32 to vector<2x128xf32>
    %165 = arith.select %161, %163, %164 : vector<2x128xi1>, vector<2x128xf32>
    %166 = arith.addf %159, %165 : vector<2x128xf32>
    %c4_i32 = arith.constant 4 : i32
    %167 = vector.broadcast %c4_i32 : i32 to vector<2x128xi32>
    %168 = arith.cmpi eq, %139, %167 : vector<2x128xi32>
    %cst_56 = arith.constant 0.000000e+00 : f32
    %169 = vector.shape_cast %138 : vector<2x1xf32> to vector<2x1xf32>
    %170 = vector.broadcast %169 : vector<2x1xf32> to vector<2x128xf32>
    %171 = vector.broadcast %cst_56 : f32 to vector<2x128xf32>
    %172 = arith.select %168, %170, %171 : vector<2x128xi1>, vector<2x128xf32>
    %173 = arith.addf %166, %172 : vector<2x128xf32>
    %c5_i32 = arith.constant 5 : i32
    %174 = vector.broadcast %c5_i32 : i32 to vector<2x128xi32>
    %175 = arith.cmpi eq, %139, %174 : vector<2x128xi32>
    %cst_57 = arith.constant 0.000000e+00 : f32
    %176 = vector.shape_cast %8 : vector<2x1xf32> to vector<2x1xf32>
    %177 = vector.broadcast %176 : vector<2x1xf32> to vector<2x128xf32>
    %178 = vector.broadcast %cst_57 : f32 to vector<2x128xf32>
    %179 = arith.select %175, %177, %178 : vector<2x128xi1>, vector<2x128xf32>
    %180 = arith.addf %173, %179 : vector<2x128xf32>
    %c0_58 = arith.constant 0 : index
    %c0_59 = arith.constant 0 : index
    %c0_60 = arith.constant 0 : index
    %181 = vector.load %arg8[%c0_58, %c0_59, %c0_60] : memref<1x2x128xf32, #tpu.memory_space<vmem>>, vector<1x2x128xf32>
    %182 = vector.shape_cast %181 : vector<1x2x128xf32> to vector<2x128xf32>
    %183 = vector.shape_cast %180 : vector<2x128xf32> to vector<1x2x128xf32>
    tpu.vector_store %arg8[%c0_58, %c0_59, %c0_60], %183 {strides = array<i32>} : memref<1x2x128xf32, #tpu.memory_space<vmem>>, vector<1x2x128xf32>,
    return
  }
  func.func @transform_0(%arg0: i32) -> (i32, i32, i32) {
    %c0_i32 = arith.constant 0 : i32
    %c0_i32_0 = arith.constant 0 : i32
    %c0_i32_1 = arith.constant 0 : i32
    return %c0_i32, %arg0, %c0_i32_0 : i32, i32, i32
  }
  func.func @transform_1(%arg0: i32) -> (i32, i32, i32) {
    %c0_i32 = arith.constant 0 : i32
    %c0_i32_0 = arith.constant 0 : i32
    %c0_i32_1 = arith.constant 0 : i32
    return %c0_i32, %arg0, %c0_i32_0 : i32, i32, i32
  }
  func.func @transform_2(%arg0: i32) -> (i32, i32, i32) {
    %c0_i32 = arith.constant 0 : i32
    %c0_i32_0 = arith.constant 0 : i32
    %c0_i32_1 = arith.constant 0 : i32
    return %c0_i32, %arg0, %c0_i32_0 : i32, i32, i32
  }
  func.func @transform_3(%arg0: i32) -> (i32, i32) {
    %c0_i32 = arith.constant 0 : i32
    %c0_i32_0 = arith.constant 0 : i32
    return %arg0, %c0_i32 : i32, i32
  }
  func.func @transform_4(%arg0: i32) -> (i32, i32) {
    %c0_i32 = arith.constant 0 : i32
    %c0_i32_0 = arith.constant 0 : i32
    return %arg0, %c0_i32 : i32, i32
  }
  func.func @transform_5(%arg0: i32) -> (i32, i32) {
    %c0_i32 = arith.constant 0 : i32
    %c0_i32_0 = arith.constant 0 : i32
    return %arg0, %c0_i32 : i32, i32
  }
  func.func @transform_6(%arg0: i32) -> (i32, i32) {
    %c0_i32 = arith.constant 0 : i32
    %c0_i32_0 = arith.constant 0 : i32
    return %arg0, %c0_i32 : i32, i32
  }
  func.func @transform_7(%arg0: i32) -> (i32, i32, i32) {
    %c0_i32 = arith.constant 0 : i32
    %c0_i32_0 = arith.constant 0 : i32
    %c0_i32_1 = arith.constant 0 : i32
    return %arg0, %c0_i32, %c0_i32_0 : i32, i32, i32
  }
  func.func @transform_8(%arg0: i32) -> (i32, i32, i32) {
    %c0_i32 = arith.constant 0 : i32
    %c0_i32_0 = arith.constant 0 : i32
    %c0_i32_1 = arith.constant 0 : i32
    return %c0_i32, %arg0, %c0_i32_0 : i32, i32, i32
  }
}

</mosaic_0001>

<llo_original>
// kernel: tpu_custom_call.1
$region0: #{tpu_custom_call.1}
  #allocation0 [shape = 'u32[]', space=smem, size = 0x4, offset = 0x4, fixed_abs, tag = 'smem constant byte address 0x4 - core index']
  #allocation1 [shape = 'u32[144,128]{1,0:T(1,128)}', space=vmem, size = 0x12000, scoped, tag = 'internal scratch']
  %s0 = inlined_call_operand.hbm [shape: f32[3,2,128], index: 0, kind: input, shape index: {}]
  %s1 = inlined_call_operand.hbm [shape: f32[3,2,128], index: 1, kind: input, shape index: {}]
  %s2 = inlined_call_operand.hbm [shape: f32[4,2,128], index: 2, kind: input, shape index: {}]
  %s3 = inlined_call_operand.vmem [shape: f32[2,28], index: 3, kind: input, shape index: {}]
  %s4 = inlined_call_operand.hbm [shape: f32[2,512], index: 4, kind: input, shape index: {}]
  %s5 = inlined_call_operand.vmem [shape: f32[2,96], index: 5, kind: input, shape index: {}]
  %s6 = inlined_call_operand.vmem [shape: f32[2,96], index: 6, kind: input, shape index: {}]
  %s7 = inlined_call_operand.hbm [shape: f32[1,2,128], index: 7, kind: output, shape index: {0}]
  %s8 = inlined_call_operand.hbm [shape: f32[2,2,128], index: 8, kind: output, shape index: {1}]
  %9 = xla_tuple %s7, %s8
  %s10 = sld [smem:[#allocation0]]
  $region62: #{tpu_custom_call.1} parent=0
    _
  %s12 = ssub.s32 1, %s10
  %s13 = scalar_select 0, %s12, %s10
  $region1: #{tpu_custom_call.1} parent=0
    #allocation2 [shape = 'u8[3072]{0}', space=vmem, size = 0xc00, scoped, tag = 'input window, operand 0, single buffered']
    #allocation3 [shape = 's32[1]{0}', space=sflag, size = 0x4, scoped, tag = 'scoped memory for tpu_custom_call.1']
    #allocation4 [shape = 's32[1]{0}', space=sflag, size = 0x4, scoped, tag = 'scoped memory for tpu_custom_call.1']
    #allocation5 [shape = 'u8[3072]{0}', space=vmem, size = 0xc00, scoped, tag = 'input window, operand 1, single buffered']
    #allocation6 [shape = 's32[1]{0}', space=sflag, size = 0x4, scoped, tag = 'scoped memory for tpu_custom_call.1']
    #allocation7 [shape = 'u8[4096]{0}', space=vmem, size = 0x1000, scoped, tag = 'input window, operand 2, single buffered']
    #allocation8 [shape = 'u8[4096]{0}', space=vmem, size = 0x1000, scoped, tag = 'input window, operand 4, single buffered']
    #allocation9 [shape = 's32[1]{0}', space=sflag, size = 0x4, scoped, tag = 'scoped memory for tpu_custom_call.1']
    #allocation10 [shape = 'u8[1024]{0}', space=vmem, size = 0x400, scoped, tag = 'output window, operand 0, single buffered']
    #allocation11 [shape = 'u8[2048]{0}', space=vmem, size = 0x800, scoped, tag = 'output window, operand 1, single buffered']
    #allocation12 [shape = 's32[1]{0}', space=sflag, size = 0x4, scoped, tag = 'scoped memory for tpu_custom_call.1']
    %14 = vsyncpa [#allocation3], 0
    %15 = vsyncpa [#allocation6], 0
    %16 = vsyncpa [#allocation9], 0
    %17 = vsyncpa [#allocation4], 0
    %18 = vsyncpa [#allocation12], 0
    // Predicated region
    $region2: #{tpu_custom_call.1} parent=1 // pred_check
      _
    $region3: #{tpu_custom_call.1} parent=1 // pred_check_branch
      %20 = sbr.rel (0) target = $region5
    $region4: #{tpu_custom_call.1} parent=1 // pred_region
      %s22 = ssub.s32 96, 96
      %23 = vsyncadd [#allocation3], %s22
      %s24 = sshll.u32 [#allocation2], 4
      %s25 = int_to_ptr.vmem [resolvable:$true] %s24
      %30 = dma.hbm_to_vmem [thread:$0]  %s0, 96, %s25, [#allocation3], 32, 32, 2
    $region5: #{tpu_custom_call.1} parent=1 // pred_fallthru
      _
    // Predicated region
    $region6: #{tpu_custom_call.1} parent=1 // pred_check
      _
    $region7: #{tpu_custom_call.1} parent=1 // pred_check_branch
      %32 = sbr.rel (0) target = $region9
    $region8: #{tpu_custom_call.1} parent=1 // pred_region
      %s34 = ssub.s32 96, 96
      %35 = vsyncadd [#allocation6], %s34
      %s36 = sshll.u32 [#allocation5], 4
      %s37 = int_to_ptr.vmem [resolvable:$true] %s36
      %42 = dma.hbm_to_vmem [thread:$0]  %s1, 96, %s37, [#allocation6], 32, 32, 2
    $region9: #{tpu_custom_call.1} parent=1 // pred_fallthru
      _
    // Predicated region
    $region10: #{tpu_custom_call.1} parent=1 // pred_check
      _
    $region11: #{tpu_custom_call.1} parent=1 // pred_check_branch
      %44 = sbr.rel (0) target = $region13
    $region12: #{tpu_custom_call.1} parent=1 // pred_region
      %s46 = ssub.s32 128, 128
      %47 = vsyncadd [#allocation6], %s46
      %s48 = sshll.u32 [#allocation7], 4
      %s49 = int_to_ptr.vmem [resolvable:$true] %s48
      %54 = dma.hbm_to_vmem [thread:$0]  %s2, 128, %s49, [#allocation6], 32, 32, 2
    $region13: #{tpu_custom_call.1} parent=1 // pred_fallthru
      _
    // Predicated region
    $region14: #{tpu_custom_call.1} parent=1 // pred_check
      _
    $region15: #{tpu_custom_call.1} parent=1 // pred_check_branch
      %56 = sbr.rel (0) target = $region17
    $region16: #{tpu_custom_call.1} parent=1 // pred_region
      _
    $region17: #{tpu_custom_call.1} parent=1 // pred_fallthru
      _
    // Predicated region
    $region18: #{tpu_custom_call.1} parent=1 // pred_check
      _
    $region19: #{tpu_custom_call.1} parent=1 // pred_check_branch
      %58 = sbr.rel (0) target = $region21
    $region20: #{tpu_custom_call.1} parent=1 // pred_region
      %s60 = ssub.s32 128, 128
      %61 = vsyncadd [#allocation9], %s60
      %s63 = sshll.u32 [#allocation8], 4
      %s64 = int_to_ptr.vmem [resolvable:$true] %s63
      %66 = dma.hbm_to_vmem [thread:$0]  %s4, 128, %s64, [#allocation9]
    $region21: #{tpu_custom_call.1} parent=1 // pred_fallthru
      _
    // Predicated region
    $region22: #{tpu_custom_call.1} parent=1 // pred_check
      _
    $region23: #{tpu_custom_call.1} parent=1 // pred_check_branch
      %68 = sbr.rel (0) target = $region25
    $region24: #{tpu_custom_call.1} parent=1 // pred_region
      _
    $region25: #{tpu_custom_call.1} parent=1 // pred_fallthru
      _
    // Predicated region
    $region26: #{tpu_custom_call.1} parent=1 // pred_check
      _
    $region27: #{tpu_custom_call.1} parent=1 // pred_check_branch
      %70 = sbr.rel (0) target = $region29
    $region28: #{tpu_custom_call.1} parent=1 // pred_region
      _
    $region29: #{tpu_custom_call.1} parent=1 // pred_fallthru
      _
    // Predicated region
    $region30: #{tpu_custom_call.1} parent=1 // pred_check
      _
    $region31: #{tpu_custom_call.1} parent=1 // pred_check_branch
      %72 = sbr.rel (0) target = $region33
    $region32: #{tpu_custom_call.1} parent=1 // pred_region
      %73 = dma.done [#allocation3], 96
    $region33: #{tpu_custom_call.1} parent=1 // pred_fallthru
      _
    // Predicated region
    $region34: #{tpu_custom_call.1} parent=1 // pred_check
      _
    $region35: #{tpu_custom_call.1} parent=1 // pred_check_branch
      %75 = sbr.rel (0) target = $region37
    $region36: #{tpu_custom_call.1} parent=1 // pred_region
      %76 = dma.done [#allocation6], 96
    $region37: #{tpu_custom_call.1} parent=1 // pred_fallthru
      _
    // Predicated region
    $region38: #{tpu_custom_call.1} parent=1 // pred_check
      _
    $region39: #{tpu_custom_call.1} parent=1 // pred_check_branch
      %78 = sbr.rel (0) target = $region41
    $region40: #{tpu_custom_call.1} parent=1 // pred_region
      %79 = dma.done [#allocation6], 128
    $region41: #{tpu_custom_call.1} parent=1 // pred_fallthru
      _
    // Predicated region
    $region42: #{tpu_custom_call.1} parent=1 // pred_check
      _
    $region43: #{tpu_custom_call.1} parent=1 // pred_check_branch
      %81 = sbr.rel (0) target = $region45
    $region44: #{tpu_custom_call.1} parent=1 // pred_region
      %82 = dma.done [#allocation9], 128
    $region45: #{tpu_custom_call.1} parent=1 // pred_fallthru
      _
    %v83 = vld [vmem:[%s3] sm:$0x3]
    %v84 = vld [vmem:[#allocation2] sm:$0x3]
    %s85 = scalar_lea.vmem [#allocation2], 2
    %v86 = vld [vmem:[%s85] sm:$0x3]
    %s87 = scalar_lea.vmem [#allocation2], 4
    %v88 = vld [vmem:[%s87] sm:$0x3]
    %90 = vset.pattern.permute.xlu0 2
    %91 = vperm.xlu0 %90, %v83
    %v92 = vpop.permute.xlu0 %91
    %v94 = vadd.f32 %v88, %v92
    %v95 = vrcp.pop %v94
    %96 = vset.pattern.permute.xlu0 0
    %97 = vperm.xlu0 %96, %v83
    %v98 = vpop.permute.xlu0 %97
    %v100 = vadd.f32 %v84, %v98
    %v101 = vmul.f32 %v100, 1000.0
    %v102 = vmul.f32 %v101, %v95
    %103 = vset.pattern.permute.xlu0 3
    %104 = vperm.xlu0 %103, %v83
    %v105 = vpop.permute.xlu0 %104
    %v107 = vadd.f32 %v102, %v105
    %108 = vset.pattern.permute.xlu0 1
    %109 = vperm.xlu0 %108, %v83
    %v110 = vpop.permute.xlu0 %109
    %v112 = vadd.f32 %v86, %v110
    %v113 = vmul.f32 %v112, 1000.0
    %v114 = vmul.f32 %v113, %v95
    %115 = vset.pattern.permute.xlu0 4
    %116 = vperm.xlu0 %115, %v83
    %v117 = vpop.permute.xlu0 %116
    %v119 = vadd.f32 %v114, %v117
    %120 = vst [vmem:[#allocation11] sm:$0x3] %v107
    %s121 = scalar_lea.vmem [#allocation11], 2
    %122 = vst [vmem:[%s121] sm:$0x3] %v119
    %s123 = scalar_lea.vmem [#allocation5], 4
    %v124 = vld [vmem:[%s123] sm:$0x3]
    %v125 = vld [vmem:[#allocation5] sm:$0x3]
    %v126 = vsub.f32 %v107, %v125
    %v127 = vand.u32 2147483647, %v126
    %128 = vset.pattern.permute.xlu0 5
    %129 = vperm.xlu0 %128, %v83
    %v130 = vpop.permute.xlu0 %129
    %v132 = vmul.f32 %v127, %v130
    %s133 = scalar_lea.vmem [#allocation5], 2
    %v134 = vld [vmem:[%s133] sm:$0x3]
    %v135 = vsub.f32 %v119, %v134
    %v136 = vand.u32 2147483647, %v135
    %137 = vset.pattern.permute.xlu0 6
    %138 = vperm.xlu0 %137, %v83
    %v139 = vpop.permute.xlu0 %138
    %v141 = vmul.f32 %v136, %v139
    %v142 = vadd.f32 %v132, %v141
    %v143 = vmul.f32 %v124, %v142
    %vm144 = vcmask 1041408
    %v145 = vsel %vm144, %v143, 0.0
    %146 = vadd.xlane.f32.xlu0 %v145
    %v147 = vpop.xlane.xlu0 %146
    %v148 = vld [vmem:[#allocation7] sm:$0x3]
    %s149 = scalar_lea.vmem [#allocation7], 2
    %v150 = vld [vmem:[%s149] sm:$0x3]
    %s151 = scalar_lea.vmem [#allocation7], 4
    %v152 = vld [vmem:[%s151] sm:$0x3]
    %s153 = scalar_lea.vmem [#allocation7], 6
    %v154 = vld [vmem:[%s153] sm:$0x3]
    %156 = vrot.lane.b32.xlu0 %v84, 127
    %v157 = vpop.permute.xlu0 %156
    %v159 = vadd.f32 %v84, %v157
    %v160 = vmul.f32 %v159, 0.5
    %162 = vrot.lane.b32.xlu0 %v148, 127
    %v163 = vpop.permute.xlu0 %162
    %v165 = vadd.f32 %v148, %v163
    %v166 = vmul.f32 %v165, 0.5
    %168 = vset.pattern.permute.xlu0 2
    %169 = vperm.xlu0 %168, %v160
    %v170 = vpop.permute.xlu0 %169
    %v172 = vsub.f32 %v84, %v170
    %174 = vset.pattern.permute.xlu0 2
    %175 = vperm.xlu0 %174, %v166
    %v176 = vpop.permute.xlu0 %175
    %v178 = vsub.f32 %v148, %v176
    %v179 = vsub.f32 %v172, %v178
    %v180 = vand.u32 2147483647, %v179
    %182 = vrot.lane.b32.xlu0 %v86, 127
    %v183 = vpop.permute.xlu0 %182
    %v185 = vadd.f32 %v86, %v183
    %v186 = vmul.f32 %v185, 0.5
    %188 = vrot.lane.b32.xlu0 %v150, 127
    %v189 = vpop.permute.xlu0 %188
    %v191 = vadd.f32 %v150, %v189
    %v192 = vmul.f32 %v191, 0.5
    %194 = vset.pattern.permute.xlu0 2
    %195 = vperm.xlu0 %194, %v186
    %v196 = vpop.permute.xlu0 %195
    %v198 = vsub.f32 %v86, %v196
    %200 = vset.pattern.permute.xlu0 2
    %201 = vperm.xlu0 %200, %v192
    %v202 = vpop.permute.xlu0 %201
    %v204 = vsub.f32 %v150, %v202
    %v205 = vsub.f32 %v198, %v204
    %v206 = vand.u32 2147483647, %v205
    %v207 = vadd.f32 %v180, %v206
    %209 = vrot.lane.b32.xlu0 %v88, 127
    %v210 = vpop.permute.xlu0 %209
    %v212 = vadd.f32 %v88, %v210
    %v213 = vmul.f32 %v212, 0.5
    %215 = vrot.lane.b32.xlu0 %v152, 127
    %v216 = vpop.permute.xlu0 %215
    %v218 = vadd.f32 %v152, %v216
    %v219 = vmul.f32 %v218, 0.5
    %221 = vset.pattern.permute.xlu0 2
    %222 = vperm.xlu0 %221, %v213
    %v223 = vpop.permute.xlu0 %222
    %v225 = vsub.f32 %v88, %v223
    %227 = vset.pattern.permute.xlu0 2
    %228 = vperm.xlu0 %227, %v219
    %v229 = vpop.permute.xlu0 %228
    %v231 = vsub.f32 %v152, %v229
    %v232 = vsub.f32 %v225, %v231
    %v233 = vand.u32 2147483647, %v232
    %v234 = vadd.f32 %v207, %v233
    %v235 = vmul.f32 %v154, %v234
    %v236 = vsel %vm144, %v235, 0.0
    %237 = vadd.xlane.f32.xlu0 %v236
    %v238 = vpop.xlane.xlu0 %237
    %v239 = vld [vmem:[%s5] sm:$0x3]
    %v240 = vld [vmem:[%s6] sm:$0x3]
    %v241 = vsub.f32 %v239, %v240
    %v242 = vand.u32 2147483647, %v241
    %vm243 = vcmask 779264
    %v244 = vsel %vm243, %v242, 0.0
    %245 = vadd.xlane.f32.xlu0 %v244
    %v246 = vpop.xlane.xlu0 %245
    %v247 = vmul.f32 %v83, %v246
    %v248 = vld [vmem:[#allocation8] sm:$0xff]
    %v250 = vrot.slane %v248, 4
    %v252 = vsub.f32 %v248, %v250
    %v253 = vmul.f32 %v252, %v252
    %v256 = vunpack.c.l.s4 1983009808
    %v257 = vunpack.c.0.s8 %v256
    %v258 = vlaneseq
    %v259 = vshrl.u32 %v258, 7
    %v260 = vsub.s32 %v257, %v259
    %v261 = vrot.slane %v253, %v260
    %v262 = vcombine.high %v261, %v261
    %v265 = vsel %vm144, %v261, 0.0
    %v266 = vsel %vm144, %v262, 0.0
    %v267 = vadd.f32 %v265, %v266
    %268 = vadd.xlane.f32.xlu0 %v267
    %v269 = vpop.xlane.xlu0 %268
    %v270 = vmul.f32 %v83, %v269
    %271 = vrot.lane.b32.xlu0 %v83, 118
    %v272 = vpop.permute.xlu0 %271
    %v274 = vsub.f32 %v83, %v272
    %v275 = vmul.f32 %v274, %v274
    %277 = vrot.lane.b32.xlu0 %v275, 120
    %v278 = vpop.permute.xlu0 %277
    %vm280 = vcmask 74752
    %v281 = vsel %vm280, %v278, 0.0
    %282 = vadd.xlane.f32.xlu0 %v281
    %v283 = vpop.xlane.xlu0 %282
    %v284 = vmul.f32 %v83, %v283
    %v285 = vlaneseq
    %v286 = vand.u32 %v285, 127
    %vm287 = vcmp.eq.s32.totalorder %v286, 0
    %v288 = vsel %vm287, %v147, 0.0
    %vm289 = vcmp.eq.s32.totalorder %v286, 1
    %v290 = vsel %vm289, %v238, 0.0
    %v291 = vadd.f32 %v288, %v290
    %vm292 = vcmp.eq.s32.totalorder %v286, 2
    %294 = vset.pattern.permute.xlu0 7
    %295 = vperm.xlu0 %294, %v247
    %v296 = vpop.permute.xlu0 %295
    %v298 = vsel %vm292, %v296, 0.0
    %v299 = vadd.f32 %v291, %v298
    %vm300 = vcmp.eq.s32.totalorder %v286, 3
    %302 = vset.pattern.permute.xlu0 7
    %303 = vperm.xlu0 %302, %v270
    %v304 = vpop.permute.xlu0 %303
    %v306 = vsel %vm300, %v304, 0.0
    %v307 = vadd.f32 %v299, %v306
    %vm308 = vcmp.eq.s32.totalorder %v286, 4
    %310 = vset.pattern.permute.xlu0 7
    %311 = vperm.xlu0 %310, %v284
    %v312 = vpop.permute.xlu0 %311
    %v314 = vsel %vm308, %v312, 0.0
    %v315 = vadd.f32 %v307, %v314
    %vm316 = vcmp.eq.s32.totalorder %v286, 5
    %317 = vset.pattern.permute.xlu0 7
    %318 = vperm.xlu0 %317, %v83
    %v319 = vpop.permute.xlu0 %318
    %v321 = vsel %vm316, %v319, 0.0
    %v322 = vadd.f32 %v315, %v321
    %323 = vst [vmem:[#allocation10] sm:$0x3] %v322
    // Predicated region
    $region46: #{tpu_custom_call.1} parent=1 // pred_check
      _
    $region47: #{tpu_custom_call.1} parent=1 // pred_check_branch
      %325 = sbr.rel (0) target = $region49
    $region48: #{tpu_custom_call.1} parent=1 // pred_region
      %s327 = ssub.s32 32, 32
      %328 = vsyncadd [#allocation4], %s327
      %s330 = sshll.u32 [#allocation10], 4
      %s331 = int_to_ptr.vmem [resolvable:$true] %s330
      %333 = dma.vmem_to_hbm [thread:$0]  %s331, 32, %s7, [#allocation4]
    $region49: #{tpu_custom_call.1} parent=1 // pred_fallthru
      _
    // Predicated region
    $region50: #{tpu_custom_call.1} parent=1 // pred_check
      _
    $region51: #{tpu_custom_call.1} parent=1 // pred_check_branch
      %335 = sbr.rel (0) target = $region53
    $region52: #{tpu_custom_call.1} parent=1 // pred_region
      %s337 = ssub.s32 64, 64
      %338 = vsyncadd [#allocation12], %s337
      %s339 = sshll.u32 [#allocation11], 4
      %s340 = int_to_ptr.vmem [resolvable:$true] %s339
      %345 = dma.vmem_to_hbm [thread:$0]  %s340, 64, %s8, [#allocation12], 32, 32, 2
    $region53: #{tpu_custom_call.1} parent=1 // pred_fallthru
      _
    // Predicated region
    $region54: #{tpu_custom_call.1} parent=1 // pred_check
      _
    $region55: #{tpu_custom_call.1} parent=1 // pred_check_branch
      %347 = sbr.rel (0) target = $region57
    $region56: #{tpu_custom_call.1} parent=1 // pred_region
      %348 = dma.done [#allocation4], 32
    $region57: #{tpu_custom_call.1} parent=1 // pred_fallthru
      _
    // Predicated region
    $region58: #{tpu_custom_call.1} parent=1 // pred_check
      _
    $region59: #{tpu_custom_call.1} parent=1 // pred_check_branch
      %350 = sbr.rel (0) target = $region61
    $region60: #{tpu_custom_call.1} parent=1 // pred_region
      %351 = dma.done [#allocation12], 64
    $region61: #{tpu_custom_call.1} parent=1 // pred_fallthru
      _
    %352 = vsyncpa [#allocation3], 1
    %353 = vsyncpa [#allocation6], 1
    %354 = vsyncpa [#allocation9], 1
    %355 = vsyncpa [#allocation4], 1
    %356 = vsyncpa [#allocation12], 1

</llo_original>
